<compile_context>
chip_gen: v7x
topology: tpu7x:2x2x1
jax: 0.10.0
libtpu: 0.0.40
codegen_flags: <defaults>
</compile_context>

<pallas_src>
import functools

import jax
import jax.numpy as jnp
from jax.experimental import pallas as pl
from jax.experimental.pallas import tpu as pltpu


_TARGET_STEP_BYTES = 2 << 20   # combined f32 x+y bytes per grid step (review: 1-4 MiB)
_MAX_BATCH_BLOCK = 64          # cap the static unroll over the batch sub-block


def _plan_tiles(N, C, Cout, HW, lane_dense):
    """Choose (T, Nb, SO): spatial positions and batch rows per grid step, and
    the pass-1 spatial 'parallel' split factor."""
    bytes_per_pos = (C + Cout) * 4
    if HW % 128 != 0:
        # Fallback: one full (lane-padded) row per step.
        # TODO(synk): non-128-multiple HW keeps masked edge stores in this path.
        T = HW
    else:
        step = 1024 if lane_dense else 128     # the 4D layout needs Gt % 8 == 0
        cands = {HW}
        for t in range(step, HW, step):
            if HW % t == 0:
                cands.add(t)
        fitting = [t for t in sorted(cands) if t * bytes_per_pos <= _TARGET_STEP_BYTES]
        T = fitting[-1] if fitting else min(cands)
    n_sblocks = HW // T
    Nb = 1
    for nb in range(1, min(N, _MAX_BATCH_BLOCK) + 1):
        if N % nb == 0 and nb * T * bytes_per_pos <= _TARGET_STEP_BYTES:
            Nb = nb
    # Spatial 'parallel' split for pass 1 (keeps v7x's 2nd TensorCore busy even
    # when N is 1/small); a no-op on single-TC v5e/v6e.
    SO = 2 if n_sblocks % 2 == 0 else 1
    return T, Nb, SO


def _conv_tile(xb, w, *, lane_dense, use_mxu):
    """1x1 conv of one batch row.

    lane_dense: xb (C, Gt, 128), w (C, Cout, 1, 128) pre-broadcast -> (Cout, Gt, 128)
    else:       xb (C, T),       w (Cout, C)                      -> (Cout, T)
    """
    if use_mxu:
        return jnp.dot(w, xb, preferred_element_type=jnp.float32)
    C = xb.shape[0]
    if lane_dense:
        # Per-channel splat: (Cout, 1, 128) * (1, Gt, 128) -> (Cout, Gt, 128).
        y = w[0] * xb[0][None]
        for c in range(1, C):
            y = y + w[c] * xb[c][None]
        return y
    # Classic broadcast-FMA chain on half-height vregs (only used when HW is not
    # a multiple of 128, so the packed 4D layout is unavailable).
    y = w[:, 0:1] * xb[0:1, :]
    for c in range(1, C):
        y = y + w[:, c:c + 1] * xb[c:c + 1, :]
    return y


def _stats_kernel(x_ref, w_ref, sum_ref, sq_ref, *, lane_dense, use_mxu):
    # x_ref: (Nb, C, Gt, 128) or (Nb, C, T); w_ref: per-path weight layout.
    # sum_ref/sq_ref: (1, 1, Cout, 1, 128) or (1, 1, Cout, 1) resident accumulators.
    @pl.when(pl.program_id(2) == 0)
    def _init():
        sum_ref[...] = jnp.zeros_like(sum_ref)
        sq_ref[...] = jnp.zeros_like(sq_ref)

    w = w_ref[...]
    ps = jnp.zeros(sum_ref.shape[2:], jnp.float32)
    pq = jnp.zeros(sq_ref.shape[2:], jnp.float32)
    for b in range(x_ref.shape[0]):                 # static unroll over batch sub-block
        xb = x_ref[b].astype(jnp.float32)           # in-kernel cast (bf16-friendly)
        y = _conv_tile(xb, w, lane_dense=lane_dense, use_mxu=use_mxu)
        # lane_dense: folds only the sublane axis -> lane-dense (Cout, 1, 128)
        # partials (no cross-lane XLU reduce, 128-wide accumulator stores).
        ps = ps + jnp.sum(y, axis=1, keepdims=True)
        pq = pq + jnp.sum(y * y, axis=1, keepdims=True)
    sum_ref[0, 0] += ps
    sq_ref[0, 0] += pq


def _apply_kernel(x_ref, w_ref, shift_ref, o_ref, *, lane_dense, use_mxu):
    # y = W_fold @ x + shift, ReLU; written straight back in NCHW order.
    w = w_ref[...]
    shift = shift_ref[...]          # (Cout, 1, 128) or (Cout, 1); broadcasts over tile
    for b in range(x_ref.shape[0]):
        xb = x_ref[b].astype(jnp.float32)
        y = _conv_tile(xb, w, lane_dense=lane_dense, use_mxu=use_mxu)
        o_ref[b] = jnp.maximum(y + shift, 0.0).astype(o_ref.dtype)


def fusion_layer_left(x_nchw, conv_w, bn_gamma, bn_beta, *, eps=1e-5):
    """x_nchw: (N, C, H, W); conv_w: (Cout, C, 1, 1); gamma/beta: (Cout,)."""
    N, C, H, W = x_nchw.shape
    Cout = conv_w.shape[0]
    HW = H * W
    M = N * HW

    w2d = conv_w.reshape(Cout, C).astype(jnp.float32)
    use_mxu = (C >= 8 and Cout >= 8)                    # per review: MXU from 8 channels
    lane_dense = (HW % 128 == 0) and (not use_mxu) and (C * Cout <= 256)
    T, Nb, SO = _plan_tiles(N, C, Cout, HW, lane_dense)
    NB = N // Nb
    n_sblocks = HW // T
    SI = n_sblocks // SO

    if lane_dense:
        HWG, Gt = HW // 128, T // 128
        x_in = x_nchw.reshape(N, C, HWG, 128)           # free reshape, native NCHW order
        x_block = (Nb, C, Gt, 128)
        x_map1 = lambda n, so, si: (n, 0, so * SI + si, 0)
        x_map2 = lambda n, s: (n, 0, s, 0)
        o_shape = (N, Cout, HWG, 128)
        o_block = (Nb, Cout, Gt, 128)
        o_map = lambda n, s: (n, 0, s, 0)
        w_shape = (C, Cout, 1, 128)                     # outer-indexed per-channel splat
        acc_shape = (NB, SO, Cout, 1, 128)              # lane-dense partials
        shift_shape = (Cout, 1, 128)

        def pack_w(wmat):                               # (Cout, C) -> (C, Cout, 1, 128)
            return jnp.broadcast_to(wmat.T[:, :, None, None], w_shape)
    else:
        x_in = x_nchw.reshape(N, C, HW)
        x_block = (Nb, C, T)
        x_map1 = lambda n, so, si: (n, 0, so * SI + si)
        x_map2 = lambda n, s: (n, 0, s)
        o_shape = (N, Cout, HW)
        o_block = (Nb, Cout, T)
        o_map = lambda n, s: (n, 0, s)
        w_shape = (Cout, C)
        acc_shape = (NB, SO, Cout, 1)
        shift_shape = (Cout, 1)

        def pack_w(wmat):
            return wmat

    w_spec1 = pl.BlockSpec(w_shape, lambda n, so, si: (0,) * len(w_shape))
    w_spec2 = pl.BlockSpec(w_shape, lambda n, s: (0,) * len(w_shape))
    acc_spec = pl.BlockSpec((1, 1) + acc_shape[2:],
                            lambda n, so, si: (n, so) + (0,) * (len(acc_shape) - 2))
    shift_spec = pl.BlockSpec(shift_shape, lambda n, s: (0,) * len(shift_shape))

    # ---- Pass 1: per-(batch-block, spatial-half) partial sums of y and y^2 ----
    part_sum, part_sq = pl.pallas_call(
        functools.partial(_stats_kernel, lane_dense=lane_dense, use_mxu=use_mxu),
        grid=(NB, SO, SI),
        out_shape=(jax.ShapeDtypeStruct(acc_shape, jnp.float32),
                   jax.ShapeDtypeStruct(acc_shape, jnp.float32)),
        in_specs=[pl.BlockSpec(x_block, x_map1), w_spec1],
        out_specs=(acc_spec, acc_spec),
        compiler_params=pltpu.CompilerParams(
            dimension_semantics=("parallel", "parallel", "arbitrary")),
    )(x_in, pack_w(w2d))

    # ---- Fold BN (training-mode batch stats) into the conv weights (tiny) ----
    red_axes = tuple(a for a in range(len(acc_shape)) if a != 2)
    sum_y = jnp.sum(part_sum, axis=red_axes)             # (Cout,)
    sum_y2 = jnp.sum(part_sq, axis=red_axes)
    mean = sum_y / M
    var = jnp.maximum(sum_y2 / M - mean * mean, 0.0)      # biased batch variance
    inv_std = jax.lax.rsqrt(var + eps)
    scale = bn_gamma.astype(jnp.float32) * inv_std        # (Cout,)
    w_fold = w2d * scale[:, None]
    shift_vec = bn_beta.astype(jnp.float32) - mean * scale
    if lane_dense:
        shift_in = jnp.broadcast_to(shift_vec[:, None, None], shift_shape)
    else:
        shift_in = shift_vec[:, None]

    # ---- Pass 2: y = W_fold @ x + shift, ReLU, streamed straight back to NCHW ----
    y = pl.pallas_call(
        functools.partial(_apply_kernel, lane_dense=lane_dense, use_mxu=use_mxu),
        grid=(NB, n_sblocks),
        out_shape=jax.ShapeDtypeStruct(o_shape, jnp.float32),
        in_specs=[pl.BlockSpec(x_block, x_map2), w_spec2, shift_spec],
        out_specs=pl.BlockSpec(o_block, o_map),
        compiler_params=pltpu.CompilerParams(
            dimension_semantics=("parallel", "parallel")),
    )(x_in, pack_w(w_fold), shift_in)

    return y.reshape(N, Cout, H, W)


def _reference(x_nchw, conv_w, bn_gamma, bn_beta, eps=1e-5):
    """Pure-JAX reference matching the PyTorch training-mode forward."""
    Cout = conv_w.shape[0]
    w2d = conv_w.reshape(Cout, -1)
    y = jnp.einsum("nchw,oc->nohw", x_nchw, w2d)
    mean = jnp.mean(y, axis=(0, 2, 3), keepdims=True)
    var = jnp.mean((y - mean) ** 2, axis=(0, 2, 3), keepdims=True)
    yn = (y - mean) / jnp.sqrt(var + eps)
    yn = yn * bn_gamma.reshape(1, Cout, 1, 1) + bn_beta.reshape(1, Cout, 1, 1)
    return jnp.maximum(yn, 0.0)


if __name__ == "__main__":
    key = jax.random.PRNGKey(0)
    k_x, k_w = jax.random.split(key)

    # Small shapes consistent with the module: channels=4, out_channels=channels.
    N, C, H, W = 2, 4, 16, 16
    Cout = C

    x = jax.random.normal(k_x, (N, C, H, W), dtype=jnp.float32)
    # PyTorch defaults: gamma=1, beta=0; deterministic small conv weights.
    conv_w = jax.random.normal(k_w, (Cout, C, 1, 1), dtype=jnp.float32) * 0.1
    gamma = jnp.ones((Cout,), dtype=jnp.float32)
    beta = jnp.zeros((Cout,), dtype=jnp.float32)

    out = fusion_layer_left(x, conv_w, gamma, beta)
    out = jax.block_until_ready(out)

    ref = _reference(x, conv_w, gamma, beta)
    assert out.shape == (N, Cout, H, W)
    assert jnp.allclose(out, ref, atol=1e-4, rtol=1e-4), "mismatch vs reference"

    # TODO(synk): BatchNorm running_mean/running_var buffer updates are not part
    # of the forward output and are not materialized here.
    print("KERNEL_OK")
</pallas_src>

<mosaic_0001>
module attributes {stable_mosaic.version = 11 : i64} {
  func.func @_stats_kernel(%arg0: i32, %arg1: i32, %arg2: i32, %arg3: memref<2x4x2x128xf32, #tpu.memory_space<vmem>>, %arg4: memref<4x4x1x128xf32, #tpu.memory_space<vmem>>, %arg5: memref<1x1x4x1x128xf32, #tpu.memory_space<vmem>>, %arg6: memref<1x1x4x1x128xf32, #tpu.memory_space<vmem>>) attributes {dimension_semantics = [#tpu.dimension_semantics<parallel>, #tpu.dimension_semantics<parallel>, #tpu.dimension_semantics<arbitrary>], iteration_bounds = array<i64: 1, 1, 1>, scalar_prefetch = 0 : i64, scratch_operands = 0 : i64, tpu.core_type = #tpu.core_type<tc>, window_params = [{transform_indices = @transform_0, window_bounds = array<i64: 2, 4, 2, 128>}, {pipeline_mode = #tpu.pipeline_mode<synchronous>, transform_indices = @transform_1, window_bounds = array<i64: 4, 4, 1, 128>}, {transform_indices = @transform_2, window_bounds = array<i64: 1, 1, 4, 1, 128>}, {transform_indices = @transform_3, window_bounds = array<i64: 1, 1, 4, 1, 128>}]} {
    %c0_i32 = arith.constant 0 : i32
    %0 = arith.cmpi eq, %arg2, %c0_i32 : i32
    %1 = arith.extui %0 : i1 to i32
    %c0_i32_0 = arith.constant 0 : i32
    %2 = arith.cmpi ne, %1, %c0_i32_0 : i32
    scf.if %2 {
      %cst_36 = arith.constant 0.000000e+00 : f32
      %106 = vector.broadcast %cst_36 : f32 to vector<1x1x4x1x128xf32>
      %c0_37 = arith.constant 0 : index
      %c0_38 = arith.constant 0 : index
      %c0_39 = arith.constant 0 : index
      %c0_40 = arith.constant 0 : index
      %c0_41 = arith.constant 0 : index
      %107 = vector.load %arg5[%c0_37, %c0_38, %c0_39, %c0_40, %c0_41] : memref<1x1x4x1x128xf32, #tpu.memory_space<vmem>>, vector<1x1x4x1x128xf32>
      tpu.vector_store %arg5[%c0_37, %c0_38, %c0_39, %c0_40, %c0_41], %106 {strides = array<i32>} : memref<1x1x4x1x128xf32, #tpu.memory_space<vmem>>, vector<1x1x4x1x128xf32>,
      %cst_42 = arith.constant 0.000000e+00 : f32
      %108 = vector.broadcast %cst_42 : f32 to vector<1x1x4x1x128xf32>
      %c0_43 = arith.constant 0 : index
      %c0_44 = arith.constant 0 : index
      %c0_45 = arith.constant 0 : index
      %c0_46 = arith.constant 0 : index
      %c0_47 = arith.constant 0 : index
      %109 = vector.load %arg6[%c0_43, %c0_44, %c0_45, %c0_46, %c0_47] : memref<1x1x4x1x128xf32, #tpu.memory_space<vmem>>, vector<1x1x4x1x128xf32>
      tpu.vector_store %arg6[%c0_43, %c0_44, %c0_45, %c0_46, %c0_47], %108 {strides = array<i32>} : memref<1x1x4x1x128xf32, #tpu.memory_space<vmem>>, vector<1x1x4x1x128xf32>,
    } else {
    }
    %c0 = arith.constant 0 : index
    %c0_1 = arith.constant 0 : index
    %c0_2 = arith.constant 0 : index
    %c0_3 = arith.constant 0 : index
    %3 = vector.load %arg4[%c0, %c0_1, %c0_2, %c0_3] : memref<4x4x1x128xf32, #tpu.memory_space<vmem>>, vector<4x4x1x128xf32>
    %cst = arith.constant 0.000000e+00 : f32
    %4 = vector.broadcast %cst : f32 to vector<4x1x128xf32>
    %cst_4 = arith.constant 0.000000e+00 : f32
    %5 = vector.broadcast %cst_4 : f32 to vector<4x1x128xf32>
    %c0_5 = arith.constant 0 : index
    %c0_6 = arith.constant 0 : index
    %c0_7 = arith.constant 0 : index
    %c0_8 = arith.constant 0 : index
    %6 = vector.load %arg3[%c0_5, %c0_6, %c0_7, %c0_8] : memref<2x4x2x128xf32, #tpu.memory_space<vmem>>, vector<1x4x2x128xf32>
    %7 = vector.shape_cast %6 : vector<1x4x2x128xf32> to vector<4x2x128xf32>
    %8 = vector.extract_strided_slice %3 {offsets = [0, 0, 0, 0], sizes = [1, 4, 1, 128], strides = [1, 1, 1, 1]} : vector<4x4x1x128xf32> to vector<1x4x1x128xf32>
    %9 = vector.shape_cast %8 : vector<1x4x1x128xf32> to vector<4x1x128xf32>
    %10 = vector.extract_strided_slice %7 {offsets = [0, 0, 0], sizes = [1, 2, 128], strides = [1, 1, 1]} : vector<4x2x128xf32> to vector<1x2x128xf32>
    %11 = vector.shape_cast %10 : vector<1x2x128xf32> to vector<2x128xf32>
    %12 = vector.shape_cast %11 : vector<2x128xf32> to vector<1x2x128xf32>
    %13 = vector.broadcast %9 : vector<4x1x128xf32> to vector<4x2x128xf32>
    %14 = vector.broadcast %12 : vector<1x2x128xf32> to vector<4x2x128xf32>
    %15 = arith.mulf %13, %14 : vector<4x2x128xf32>
    %16 = vector.extract_strided_slice %3 {offsets = [1, 0, 0, 0], sizes = [1, 4, 1, 128], strides = [1, 1, 1, 1]} : vector<4x4x1x128xf32> to vector<1x4x1x128xf32>
    %17 = vector.shape_cast %16 : vector<1x4x1x128xf32> to vector<4x1x128xf32>
    %18 = vector.extract_strided_slice %7 {offsets = [1, 0, 0], sizes = [1, 2, 128], strides = [1, 1, 1]} : vector<4x2x128xf32> to vector<1x2x128xf32>
    %19 = vector.shape_cast %18 : vector<1x2x128xf32> to vector<2x128xf32>
    %20 = vector.shape_cast %19 : vector<2x128xf32> to vector<1x2x128xf32>
    %21 = vector.broadcast %17 : vector<4x1x128xf32> to vector<4x2x128xf32>
    %22 = vector.broadcast %20 : vector<1x2x128xf32> to vector<4x2x128xf32>
    %23 = arith.mulf %21, %22 : vector<4x2x128xf32>
    %24 = arith.addf %15, %23 : vector<4x2x128xf32>
    %25 = vector.extract_strided_slice %3 {offsets = [2, 0, 0, 0], sizes = [1, 4, 1, 128], strides = [1, 1, 1, 1]} : vector<4x4x1x128xf32> to vector<1x4x1x128xf32>
    %26 = vector.shape_cast %25 : vector<1x4x1x128xf32> to vector<4x1x128xf32>
    %27 = vector.extract_strided_slice %7 {offsets = [2, 0, 0], sizes = [1, 2, 128], strides = [1, 1, 1]} : vector<4x2x128xf32> to vector<1x2x128xf32>
    %28 = vector.shape_cast %27 : vector<1x2x128xf32> to vector<2x128xf32>
    %29 = vector.shape_cast %28 : vector<2x128xf32> to vector<1x2x128xf32>
    %30 = vector.broadcast %26 : vector<4x1x128xf32> to vector<4x2x128xf32>
    %31 = vector.broadcast %29 : vector<1x2x128xf32> to vector<4x2x128xf32>
    %32 = arith.mulf %30, %31 : vector<4x2x128xf32>
    %33 = arith.addf %24, %32 : vector<4x2x128xf32>
    %34 = vector.extract_strided_slice %3 {offsets = [3, 0, 0, 0], sizes = [1, 4, 1, 128], strides = [1, 1, 1, 1]} : vector<4x4x1x128xf32> to vector<1x4x1x128xf32>
    %35 = vector.shape_cast %34 : vector<1x4x1x128xf32> to vector<4x1x128xf32>
    %36 = vector.extract_strided_slice %7 {offsets = [3, 0, 0], sizes = [1, 2, 128], strides = [1, 1, 1]} : vector<4x2x128xf32> to vector<1x2x128xf32>
    %37 = vector.shape_cast %36 : vector<1x2x128xf32> to vector<2x128xf32>
    %38 = vector.shape_cast %37 : vector<2x128xf32> to vector<1x2x128xf32>
    %39 = vector.broadcast %35 : vector<4x1x128xf32> to vector<4x2x128xf32>
    %40 = vector.broadcast %38 : vector<1x2x128xf32> to vector<4x2x128xf32>
    %41 = arith.mulf %39, %40 : vector<4x2x128xf32>
    %42 = arith.addf %33, %41 : vector<4x2x128xf32>
    %cst_9 = arith.constant dense<0.000000e+00> : vector<4x128xf32>
    %43 = vector.multi_reduction <add>, %42, %cst_9 [1] : vector<4x2x128xf32> to vector<4x128xf32>
    %44 = vector.shape_cast %43 : vector<4x128xf32> to vector<4x1x128xf32>
    %45 = arith.addf %4, %44 : vector<4x1x128xf32>
    %46 = arith.mulf %42, %42 : vector<4x2x128xf32>
    %cst_10 = arith.constant dense<0.000000e+00> : vector<4x128xf32>
    %47 = vector.multi_reduction <add>, %46, %cst_10 [1] : vector<4x2x128xf32> to vector<4x128xf32>
    %48 = vector.shape_cast %47 : vector<4x128xf32> to vector<4x1x128xf32>
    %49 = arith.addf %5, %48 : vector<4x1x128xf32>
    %c1 = arith.constant 1 : index
    %c0_11 = arith.constant 0 : index
    %c0_12 = arith.constant 0 : index
    %c0_13 = arith.constant 0 : index
    %50 = vector.load %arg3[%c1, %c0_11, %c0_12, %c0_13] : memref<2x4x2x128xf32, #tpu.memory_space<vmem>>, vector<1x4x2x128xf32>
    %51 = vector.shape_cast %50 : vector<1x4x2x128xf32> to vector<4x2x128xf32>
    %52 = vector.extract_strided_slice %3 {offsets = [0, 0, 0, 0], sizes = [1, 4, 1, 128], strides = [1, 1, 1, 1]} : vector<4x4x1x128xf32> to vector<1x4x1x128xf32>
    %53 = vector.shape_cast %52 : vector<1x4x1x128xf32> to vector<4x1x128xf32>
    %54 = vector.extract_strided_slice %51 {offsets = [0, 0, 0], sizes = [1, 2, 128], strides = [1, 1, 1]} : vector<4x2x128xf32> to vector<1x2x128xf32>
    %55 = vector.shape_cast %54 : vector<1x2x128xf32> to vector<2x128xf32>
    %56 = vector.shape_cast %55 : vector<2x128xf32> to vector<1x2x128xf32>
    %57 = vector.broadcast %53 : vector<4x1x128xf32> to vector<4x2x128xf32>
    %58 = vector.broadcast %56 : vector<1x2x128xf32> to vector<4x2x128xf32>
    %59 = arith.mulf %57, %58 : vector<4x2x128xf32>
    %60 = vector.extract_strided_slice %3 {offsets = [1, 0, 0, 0], sizes = [1, 4, 1, 128], strides = [1, 1, 1, 1]} : vector<4x4x1x128xf32> to vector<1x4x1x128xf32>
    %61 = vector.shape_cast %60 : vector<1x4x1x128xf32> to vector<4x1x128xf32>
    %62 = vector.extract_strided_slice %51 {offsets = [1, 0, 0], sizes = [1, 2, 128], strides = [1, 1, 1]} : vector<4x2x128xf32> to vector<1x2x128xf32>
    %63 = vector.shape_cast %62 : vector<1x2x128xf32> to vector<2x128xf32>
    %64 = vector.shape_cast %63 : vector<2x128xf32> to vector<1x2x128xf32>
    %65 = vector.broadcast %61 : vector<4x1x128xf32> to vector<4x2x128xf32>
    %66 = vector.broadcast %64 : vector<1x2x128xf32> to vector<4x2x128xf32>
    %67 = arith.mulf %65, %66 : vector<4x2x128xf32>
    %68 = arith.addf %59, %67 : vector<4x2x128xf32>
    %69 = vector.extract_strided_slice %3 {offsets = [2, 0, 0, 0], sizes = [1, 4, 1, 128], strides = [1, 1, 1, 1]} : vector<4x4x1x128xf32> to vector<1x4x1x128xf32>
    %70 = vector.shape_cast %69 : vector<1x4x1x128xf32> to vector<4x1x128xf32>
    %71 = vector.extract_strided_slice %51 {offsets = [2, 0, 0], sizes = [1, 2, 128], strides = [1, 1, 1]} : vector<4x2x128xf32> to vector<1x2x128xf32>
    %72 = vector.shape_cast %71 : vector<1x2x128xf32> to vector<2x128xf32>
    %73 = vector.shape_cast %72 : vector<2x128xf32> to vector<1x2x128xf32>
    %74 = vector.broadcast %70 : vector<4x1x128xf32> to vector<4x2x128xf32>
    %75 = vector.broadcast %73 : vector<1x2x128xf32> to vector<4x2x128xf32>
    %76 = arith.mulf %74, %75 : vector<4x2x128xf32>
    %77 = arith.addf %68, %76 : vector<4x2x128xf32>
    %78 = vector.extract_strided_slice %3 {offsets = [3, 0, 0, 0], sizes = [1, 4, 1, 128], strides = [1, 1, 1, 1]} : vector<4x4x1x128xf32> to vector<1x4x1x128xf32>
    %79 = vector.shape_cast %78 : vector<1x4x1x128xf32> to vector<4x1x128xf32>
    %80 = vector.extract_strided_slice %51 {offsets = [3, 0, 0], sizes = [1, 2, 128], strides = [1, 1, 1]} : vector<4x2x128xf32> to vector<1x2x128xf32>
    %81 = vector.shape_cast %80 : vector<1x2x128xf32> to vector<2x128xf32>
    %82 = vector.shape_cast %81 : vector<2x128xf32> to vector<1x2x128xf32>
    %83 = vector.broadcast %79 : vector<4x1x128xf32> to vector<4x2x128xf32>
    %84 = vector.broadcast %82 : vector<1x2x128xf32> to vector<4x2x128xf32>
    %85 = arith.mulf %83, %84 : vector<4x2x128xf32>
    %86 = arith.addf %77, %85 : vector<4x2x128xf32>
    %cst_14 = arith.constant dense<0.000000e+00> : vector<4x128xf32>
    %87 = vector.multi_reduction <add>, %86, %cst_14 [1] : vector<4x2x128xf32> to vector<4x128xf32>
    %88 = vector.shape_cast %87 : vector<4x128xf32> to vector<4x1x128xf32>
    %89 = arith.addf %45, %88 : vector<4x1x128xf32>
    %90 = arith.mulf %86, %86 : vector<4x2x128xf32>
    %cst_15 = arith.constant dense<0.000000e+00> : vector<4x128xf32>
    %91 = vector.multi_reduction <add>, %90, %cst_15 [1] : vector<4x2x128xf32> to vector<4x128xf32>
    %92 = vector.shape_cast %91 : vector<4x128xf32> to vector<4x1x128xf32>
    %93 = arith.addf %49, %92 : vector<4x1x128xf32>
    %c0_16 = arith.constant 0 : index
    %c0_17 = arith.constant 0 : index
    %c0_18 = arith.constant 0 : index
    %c0_19 = arith.constant 0 : index
    %c0_20 = arith.constant 0 : index
    %94 = vector.load %arg5[%c0_16, %c0_17, %c0_18, %c0_19, %c0_20] : memref<1x1x4x1x128xf32, #tpu.memory_space<vmem>>, vector<1x1x4x1x128xf32>
    %95 = vector.shape_cast %94 : vector<1x1x4x1x128xf32> to vector<4x1x128xf32>
    %96 = arith.addf %95, %89 : vector<4x1x128xf32>
    %c0_21 = arith.constant 0 : index
    %c0_22 = arith.constant 0 : index
    %c0_23 = arith.constant 0 : index
    %c0_24 = arith.constant 0 : index
    %c0_25 = arith.constant 0 : index
    %97 = vector.load %arg5[%c0_21, %c0_22, %c0_23, %c0_24, %c0_25] : memref<1x1x4x1x128xf32, #tpu.memory_space<vmem>>, vector<1x1x4x1x128xf32>
    %98 = vector.shape_cast %97 : vector<1x1x4x1x128xf32> to vector<4x1x128xf32>
    %99 = vector.shape_cast %96 : vector<4x1x128xf32> to vector<1x1x4x1x128xf32>
    tpu.vector_store %arg5[%c0_21, %c0_22, %c0_23, %c0_24, %c0_25], %99 {strides = array<i32>} : memref<1x1x4x1x128xf32, #tpu.memory_space<vmem>>, vector<1x1x4x1x128xf32>,
    %c0_26 = arith.constant 0 : index
    %c0_27 = arith.constant 0 : index
    %c0_28 = arith.constant 0 : index
    %c0_29 = arith.constant 0 : index
    %c0_30 = arith.constant 0 : index
    %100 = vector.load %arg6[%c0_26, %c0_27, %c0_28, %c0_29, %c0_30] : memref<1x1x4x1x128xf32, #tpu.memory_space<vmem>>, vector<1x1x4x1x128xf32>
    %101 = vector.shape_cast %100 : vector<1x1x4x1x128xf32> to vector<4x1x128xf32>
    %102 = arith.addf %101, %93 : vector<4x1x128xf32>
    %c0_31 = arith.constant 0 : index
    %c0_32 = arith.constant 0 : index
    %c0_33 = arith.constant 0 : index
    %c0_34 = arith.constant 0 : index
    %c0_35 = arith.constant 0 : index
    %103 = vector.load %arg6[%c0_31, %c0_32, %c0_33, %c0_34, %c0_35] : memref<1x1x4x1x128xf32, #tpu.memory_space<vmem>>, vector<1x1x4x1x128xf32>
    %104 = vector.shape_cast %103 : vector<1x1x4x1x128xf32> to vector<4x1x128xf32>
    %105 = vector.shape_cast %102 : vector<4x1x128xf32> to vector<1x1x4x1x128xf32>
    tpu.vector_store %arg6[%c0_31, %c0_32, %c0_33, %c0_34, %c0_35], %105 {strides = array<i32>} : memref<1x1x4x1x128xf32, #tpu.memory_space<vmem>>, vector<1x1x4x1x128xf32>,
    return
  }
  func.func @transform_0(%arg0: i32, %arg1: i32, %arg2: i32) -> (i32, i32, i32, i32) {
    %c1_i32 = arith.constant 1 : i32
    %0 = arith.muli %arg1, %c1_i32 : i32
    %1 = arith.addi %0, %arg2 : i32
    %c0_i32 = arith.constant 0 : i32
    %c0_i32_0 = arith.constant 0 : i32
    %c0_i32_1 = arith.constant 0 : i32
    return %arg0, %c0_i32, %1, %c0_i32_0 : i32, i32, i32, i32
  }
  func.func @transform_1(%arg0: i32, %arg1: i32, %arg2: i32) -> (i32, i32, i32, i32) {
    %c0_i32 = arith.constant 0 : i32
    %c0_i32_0 = arith.constant 0 : i32
    %c0_i32_1 = arith.constant 0 : i32
    %c0_i32_2 = arith.constant 0 : i32
    %c0_i32_3 = arith.constant 0 : i32
    return %c0_i32, %c0_i32_0, %c0_i32_1, %c0_i32_2 : i32, i32, i32, i32
  }
  func.func @transform_2(%arg0: i32, %arg1: i32, %arg2: i32) -> (i32, i32, i32, i32, i32) {
    %c0_i32 = arith.constant 0 : i32
    %c0_i32_0 = arith.constant 0 : i32
    %c0_i32_1 = arith.constant 0 : i32
    %c0_i32_2 = arith.constant 0 : i32
    return %arg0, %arg1, %c0_i32, %c0_i32_0, %c0_i32_1 : i32, i32, i32, i32, i32
  }
  func.func @transform_3(%arg0: i32, %arg1: i32, %arg2: i32) -> (i32, i32, i32, i32, i32) {
    %c0_i32 = arith.constant 0 : i32
    %c0_i32_0 = arith.constant 0 : i32
    %c0_i32_1 = arith.constant 0 : i32
    %c0_i32_2 = arith.constant 0 : i32
    return %arg0, %arg1, %c0_i32, %c0_i32_0, %c0_i32_1 : i32, i32, i32, i32, i32
  }
}

</mosaic_0001>

<llo_original>
// kernel: tpu_custom_call.1
$region0: #{tpu_custom_call.1}
  #allocation0 [shape = 'u32[]', space=smem, size = 0x4, offset = 0x4, fixed_abs, tag = 'smem constant byte address 0x4 - core index']
  #allocation1 [shape = 'u32[144,128]{1,0:T(1,128)}', space=vmem, size = 0x12000, scoped, tag = 'internal scratch']
  %s0 = inlined_call_operand.hbm [shape: f32[2,4,2,128], index: 0, kind: input, shape index: {}]
  %s1 = inlined_call_operand.hbm [shape: f32[4,4,1,128], index: 1, kind: input, shape index: {}]
  %s2 = inlined_call_operand.hbm [shape: f32[1,1,4,1,128], index: 2, kind: output, shape index: {0}]
  %s3 = inlined_call_operand.hbm [shape: f32[1,1,4,1,128], index: 3, kind: output, shape index: {1}]
  %4 = xla_tuple %s2, %s3
  %s5 = sld [smem:[#allocation0]]
  $region38: #{tpu_custom_call.1} parent=0
    _
  %s7 = ssub.s32 1, %s5
  %s8 = scalar_select 0, %s7, %s5
  $region1: #{tpu_custom_call.1} parent=0
    #allocation2 [shape = 'u8[8192]{0}', space=vmem, size = 0x2000, scoped, tag = 'input window, operand 0, single buffered']
    #allocation3 [shape = 's32[1]{0}', space=sflag, size = 0x4, scoped, tag = 'scoped memory for tpu_custom_call.1']
    #allocation4 [shape = 's32[1]{0}', space=sflag, size = 0x4, scoped, tag = 'scoped memory for tpu_custom_call.1']
    #allocation5 [shape = 'u8[8192]{0}', space=vmem, size = 0x2000, scoped, tag = 'input window, operand 1, single buffered']
    #allocation6 [shape = 's32[1]{0}', space=sflag, size = 0x4, scoped, tag = 'scoped memory for tpu_custom_call.1']
    #allocation7 [shape = 'u8[2048]{0}', space=vmem, size = 0x800, scoped, tag = 'output window, operand 0, single buffered']
    #allocation8 [shape = 'u8[2048]{0}', space=vmem, size = 0x800, scoped, tag = 'output window, operand 1, single buffered']
    #allocation9 [shape = 's32[1]{0}', space=sflag, size = 0x4, scoped, tag = 'scoped memory for tpu_custom_call.1']
    %9 = vsyncpa [#allocation3], 0
    %10 = vsyncpa [#allocation6], 0
    %11 = vsyncpa [#allocation4], 0
    %12 = vsyncpa [#allocation9], 0
    // Predicated region
    $region2: #{tpu_custom_call.1} parent=1 // pred_check
      _
    $region3: #{tpu_custom_call.1} parent=1 // pred_check_branch
      %14 = sbr.rel (0) target = $region5
    $region4: #{tpu_custom_call.1} parent=1 // pred_region
      %s15 = sadd.s32 0, 0
      %s17 = ssub.s32 256, 256
      %18 = vsyncadd [#allocation3], %s17
      %s19 = smul.addr %s15, 32
      %s20 = scalar_lea.hbm %s0, %s19
      %s21 = sshll.u32 [#allocation2], 4
      %s22 = int_to_ptr.vmem [resolvable:$true] %s21
      %27 = dma.hbm_to_vmem [thread:$0]  %s20, 256, %s22, [#allocation3], 32, 32, 2
    $region5: #{tpu_custom_call.1} parent=1 // pred_fallthru
      _
    // Predicated region
    $region6: #{tpu_custom_call.1} parent=1 // pred_check
      _
    $region7: #{tpu_custom_call.1} parent=1 // pred_check_branch
      %29 = sbr.rel (0) target = $region9
    $region8: #{tpu_custom_call.1} parent=1 // pred_region
      %s31 = ssub.s32 256, 256
      %32 = vsyncadd [#allocation6], %s31
      %s33 = sshll.u32 [#allocation5], 4
      %s34 = int_to_ptr.vmem [resolvable:$true] %s33
      %39 = dma.hbm_to_vmem [thread:$0]  %s1, 256, %s34, [#allocation6], 16, 16, 1
    $region9: #{tpu_custom_call.1} parent=1 // pred_fallthru
      _
    // Predicated region
    $region10: #{tpu_custom_call.1} parent=1 // pred_check
      _
    $region11: #{tpu_custom_call.1} parent=1 // pred_check_branch
      %41 = sbr.rel (0) target = $region13
    $region12: #{tpu_custom_call.1} parent=1 // pred_region
      %42 = dma.done [#allocation3], 256
    $region13: #{tpu_custom_call.1} parent=1 // pred_fallthru
      _
    // Predicated region
    $region14: #{tpu_custom_call.1} parent=1 // pred_check
      _
    $region15: #{tpu_custom_call.1} parent=1 // pred_check_branch
      %44 = sbr.rel (0) target = $region17
    $region16: #{tpu_custom_call.1} parent=1 // pred_region
      %45 = dma.done [#allocation6], 256
    $region17: #{tpu_custom_call.1} parent=1 // pred_fallthru
      _
    %s46 = sadd.s32 0, 0
    %p47 = scmp.eq.s32.totalorder 0, 0
    // Predicated region
    $region18: #{tpu_custom_call.1} parent=1 // pred_check
      %p48 = pneg %p47
    $region19: #{tpu_custom_call.1} parent=1 // pred_check_branch
      %50 = sbr.rel (%p48) target = $region21
    $region20: #{tpu_custom_call.1} parent=1 // pred_region
      %51 = vst [vmem:[#allocation7] sm:$0x1] 0.0
      %52 = vst [vmem:[#allocation7 + $0x1] sm:$0x1] 0.0
      %53 = vst [vmem:[#allocation7 + $0x2] sm:$0x1] 0.0
      %54 = vst [vmem:[#allocation7 + $0x3] sm:$0x1] 0.0
      %55 = vst [vmem:[#allocation8] sm:$0x1] 0.0
      %56 = vst [vmem:[#allocation8 + $0x1] sm:$0x1] 0.0
      %57 = vst [vmem:[#allocation8 + $0x2] sm:$0x1] 0.0
      %58 = vst [vmem:[#allocation8 + $0x3] sm:$0x1] 0.0
    $region21: #{tpu_custom_call.1} parent=1 // pred_fallthru
      _
    %v59 = vld [vmem:[#allocation5] sm:$0x1]
    %v60 = vld [vmem:[#allocation5 + $0x1] sm:$0x1]
    %v61 = vld [vmem:[#allocation5 + $0x2] sm:$0x1]
    %v62 = vld [vmem:[#allocation5 + $0x3] sm:$0x1]
    %v63 = vld [vmem:[#allocation5 + $0x4] sm:$0x1]
    %v64 = vld [vmem:[#allocation5 + $0x5] sm:$0x1]
    %v65 = vld [vmem:[#allocation5 + $0x6] sm:$0x1]
    %v66 = vld [vmem:[#allocation5 + $0x7] sm:$0x1]
    %v67 = vld [vmem:[#allocation5 + $0x8] sm:$0x1]
    %v68 = vld [vmem:[#allocation5 + $0x9] sm:$0x1]
    %v69 = vld [vmem:[#allocation5 + $0xa] sm:$0x1]
    %v70 = vld [vmem:[#allocation5 + $0xb] sm:$0x1]
    %v71 = vld [vmem:[#allocation5 + $0xc] sm:$0x1]
    %v72 = vld [vmem:[#allocation5 + $0xd] sm:$0x1]
    %v73 = vld [vmem:[#allocation5 + $0xe] sm:$0x1]
    %v74 = vld [vmem:[#allocation5 + $0xf] sm:$0x1]
    %v75 = vld [vmem:[#allocation2] sm:$0x3]
    %v76 = vld [vmem:[#allocation2 + $0x2] sm:$0x3]
    %v77 = vld [vmem:[#allocation2 + $0x4] sm:$0x3]
    %v78 = vld [vmem:[#allocation2 + $0x6] sm:$0x3]
    %v83 = vlaneseq
    %v84 = vshrl.u32 %v83, 7
    %v85 = vsub.s32 0, %v84
    %v86 = vrot.slane %v59, %v85
    %v87 = vlaneseq
    %v88 = vshrl.u32 %v87, 7
    %v89 = vsub.s32 0, %v88
    %v90 = vrot.slane %v60, %v89
    %v91 = vlaneseq
    %v92 = vshrl.u32 %v91, 7
    %v93 = vsub.s32 0, %v92
    %v94 = vrot.slane %v61, %v93
    %v95 = vlaneseq
    %v96 = vshrl.u32 %v95, 7
    %v97 = vsub.s32 0, %v96
    %v98 = vrot.slane %v62, %v97
    %v103 = vmul.f32 %v86, %v75
    %v104 = vmul.f32 %v90, %v75
    %v105 = vmul.f32 %v94, %v75
    %v106 = vmul.f32 %v98, %v75
    %v111 = vlaneseq
    %v112 = vshrl.u32 %v111, 7
    %v113 = vsub.s32 0, %v112
    %v114 = vrot.slane %v63, %v113
    %v115 = vlaneseq
    %v116 = vshrl.u32 %v115, 7
    %v117 = vsub.s32 0, %v116
    %v118 = vrot.slane %v64, %v117
    %v119 = vlaneseq
    %v120 = vshrl.u32 %v119, 7
    %v121 = vsub.s32 0, %v120
    %v122 = vrot.slane %v65, %v121
    %v123 = vlaneseq
    %v124 = vshrl.u32 %v123, 7
    %v125 = vsub.s32 0, %v124
    %v126 = vrot.slane %v66, %v125
    %v131 = vmul.f32 %v114, %v76
    %v132 = vmul.f32 %v118, %v76
    %v133 = vmul.f32 %v122, %v76
    %v134 = vmul.f32 %v126, %v76
    %v135 = vadd.f32 %v103, %v131
    %v136 = vadd.f32 %v104, %v132
    %v137 = vadd.f32 %v105, %v133
    %v138 = vadd.f32 %v106, %v134
    %v143 = vlaneseq
    %v144 = vshrl.u32 %v143, 7
    %v145 = vsub.s32 0, %v144
    %v146 = vrot.slane %v67, %v145
    %v147 = vlaneseq
    %v148 = vshrl.u32 %v147, 7
    %v149 = vsub.s32 0, %v148
    %v150 = vrot.slane %v68, %v149
    %v151 = vlaneseq
    %v152 = vshrl.u32 %v151, 7
    %v153 = vsub.s32 0, %v152
    %v154 = vrot.slane %v69, %v153
    %v155 = vlaneseq
    %v156 = vshrl.u32 %v155, 7
    %v157 = vsub.s32 0, %v156
    %v158 = vrot.slane %v70, %v157
    %v163 = vmul.f32 %v146, %v77
    %v164 = vmul.f32 %v150, %v77
    %v165 = vmul.f32 %v154, %v77
    %v166 = vmul.f32 %v158, %v77
    %v167 = vadd.f32 %v135, %v163
    %v168 = vadd.f32 %v136, %v164
    %v169 = vadd.f32 %v137, %v165
    %v170 = vadd.f32 %v138, %v166
    %v175 = vlaneseq
    %v176 = vshrl.u32 %v175, 7
    %v177 = vsub.s32 0, %v176
    %v178 = vrot.slane %v71, %v177
    %v179 = vlaneseq
    %v180 = vshrl.u32 %v179, 7
    %v181 = vsub.s32 0, %v180
    %v182 = vrot.slane %v72, %v181
    %v183 = vlaneseq
    %v184 = vshrl.u32 %v183, 7
    %v185 = vsub.s32 0, %v184
    %v186 = vrot.slane %v73, %v185
    %v187 = vlaneseq
    %v188 = vshrl.u32 %v187, 7
    %v189 = vsub.s32 0, %v188
    %v190 = vrot.slane %v74, %v189
    %v195 = vmul.f32 %v178, %v78
    %v196 = vmul.f32 %v182, %v78
    %v197 = vmul.f32 %v186, %v78
    %v198 = vmul.f32 %v190, %v78
    %v199 = vadd.f32 %v167, %v195
    %v200 = vadd.f32 %v168, %v196
    %v201 = vadd.f32 %v169, %v197
    %v202 = vadd.f32 %v170, %v198
    %vm203 = vcmask 1041408
    %v204 = vsel %vm203, %v199, 0.0
    %v205 = vrot.slane %v204, 4
    %v206 = vadd.f32 %v204, %v205
    %v207 = vrot.slane %v206, 2
    %v208 = vadd.f32 %v206, %v207
    %v209 = vrot.slane %v208, 1
    %v210 = vadd.f32 %v208, %v209
    %v211 = vsel %vm203, %v200, 0.0
    %v212 = vrot.slane %v211, 4
    %v213 = vadd.f32 %v211, %v212
    %v214 = vrot.slane %v213, 2
    %v215 = vadd.f32 %v213, %v214
    %v216 = vrot.slane %v215, 1
    %v217 = vadd.f32 %v215, %v216
    %v218 = vsel %vm203, %v201, 0.0
    %v219 = vrot.slane %v218, 4
    %v220 = vadd.f32 %v218, %v219
    %v221 = vrot.slane %v220, 2
    %v222 = vadd.f32 %v220, %v221
    %v223 = vrot.slane %v222, 1
    %v224 = vadd.f32 %v222, %v223
    %v225 = vsel %vm203, %v202, 0.0
    %v226 = vrot.slane %v225, 4
    %v227 = vadd.f32 %v225, %v226
    %v228 = vrot.slane %v227, 2
    %v229 = vadd.f32 %v227, %v228
    %v230 = vrot.slane %v229, 1
    %v231 = vadd.f32 %v229, %v230
    %v232 = vadd.f32 %v210, 0.0
    %v233 = vadd.f32 %v217, 0.0
    %v234 = vadd.f32 %v224, 0.0
    %v235 = vadd.f32 %v231, 0.0
    %v236 = vmul.f32 %v199, %v199
    %v237 = vmul.f32 %v200, %v200
    %v238 = vmul.f32 %v201, %v201
    %v239 = vmul.f32 %v202, %v202
    %v240 = vsel %vm203, %v236, 0.0
    %v241 = vrot.slane %v240, 4
    %v242 = vadd.f32 %v240, %v241
    %v243 = vrot.slane %v242, 2
    %v244 = vadd.f32 %v242, %v243
    %v245 = vrot.slane %v244, 1
    %v246 = vadd.f32 %v244, %v245
    %v247 = vsel %vm203, %v237, 0.0
    %v248 = vrot.slane %v247, 4
    %v249 = vadd.f32 %v247, %v248
    %v250 = vrot.slane %v249, 2
    %v251 = vadd.f32 %v249, %v250
    %v252 = vrot.slane %v251, 1
    %v253 = vadd.f32 %v251, %v252
    %v254 = vsel %vm203, %v238, 0.0
    %v255 = vrot.slane %v254, 4
    %v256 = vadd.f32 %v254, %v255
    %v257 = vrot.slane %v256, 2
    %v258 = vadd.f32 %v256, %v257
    %v259 = vrot.slane %v258, 1
    %v260 = vadd.f32 %v258, %v259
    %v261 = vsel %vm203, %v239, 0.0
    %v262 = vrot.slane %v261, 4
    %v263 = vadd.f32 %v261, %v262
    %v264 = vrot.slane %v263, 2
    %v265 = vadd.f32 %v263, %v264
    %v266 = vrot.slane %v265, 1
    %v267 = vadd.f32 %v265, %v266
    %v268 = vadd.f32 %v246, 0.0
    %v269 = vadd.f32 %v253, 0.0
    %v270 = vadd.f32 %v260, 0.0
    %v271 = vadd.f32 %v267, 0.0
    %s272 = scalar_lea.vmem [#allocation2], 8
    %v273 = vld [vmem:[%s272] sm:$0x3]
    %v274 = vld [vmem:[%s272 + $0x2] sm:$0x3]
    %v275 = vld [vmem:[%s272 + $0x4] sm:$0x3]
    %v276 = vld [vmem:[%s272 + $0x6] sm:$0x3]
    %v277 = vmul.f32 %v86, %v273
    %v278 = vmul.f32 %v90, %v273
    %v279 = vmul.f32 %v94, %v273
    %v280 = vmul.f32 %v98, %v273
    %v281 = vmul.f32 %v114, %v274
    %v282 = vmul.f32 %v118, %v274
    %v283 = vmul.f32 %v122, %v274
    %v284 = vmul.f32 %v126, %v274
    %v285 = vadd.f32 %v277, %v281
    %v286 = vadd.f32 %v278, %v282
    %v287 = vadd.f32 %v279, %v283
    %v288 = vadd.f32 %v280, %v284
    %v289 = vmul.f32 %v146, %v275
    %v290 = vmul.f32 %v150, %v275
    %v291 = vmul.f32 %v154, %v275
    %v292 = vmul.f32 %v158, %v275
    %v293 = vadd.f32 %v285, %v289
    %v294 = vadd.f32 %v286, %v290
    %v295 = vadd.f32 %v287, %v291
    %v296 = vadd.f32 %v288, %v292
    %v297 = vmul.f32 %v178, %v276
    %v298 = vmul.f32 %v182, %v276
    %v299 = vmul.f32 %v186, %v276
    %v300 = vmul.f32 %v190, %v276
    %v301 = vadd.f32 %v293, %v297
    %v302 = vadd.f32 %v294, %v298
    %v303 = vadd.f32 %v295, %v299
    %v304 = vadd.f32 %v296, %v300
    %v305 = vsel %vm203, %v301, 0.0
    %v306 = vrot.slane %v305, 4
    %v307 = vadd.f32 %v305, %v306
    %v308 = vrot.slane %v307, 2
    %v309 = vadd.f32 %v307, %v308
    %v310 = vrot.slane %v309, 1
    %v311 = vadd.f32 %v309, %v310
    %v312 = vsel %vm203, %v302, 0.0
    %v313 = vrot.slane %v312, 4
    %v314 = vadd.f32 %v312, %v313
    %v315 = vrot.slane %v314, 2
    %v316 = vadd.f32 %v314, %v315
    %v317 = vrot.slane %v316, 1
    %v318 = vadd.f32 %v316, %v317
    %v319 = vsel %vm203, %v303, 0.0
    %v320 = vrot.slane %v319, 4
    %v321 = vadd.f32 %v319, %v320
    %v322 = vrot.slane %v321, 2
    %v323 = vadd.f32 %v321, %v322
    %v324 = vrot.slane %v323, 1
    %v325 = vadd.f32 %v323, %v324
    %v326 = vsel %vm203, %v304, 0.0
    %v327 = vrot.slane %v326, 4
    %v328 = vadd.f32 %v326, %v327
    %v329 = vrot.slane %v328, 2
    %v330 = vadd.f32 %v328, %v329
    %v331 = vrot.slane %v330, 1
    %v332 = vadd.f32 %v330, %v331
    %v333 = vadd.f32 %v232, %v311
    %v334 = vadd.f32 %v233, %v318
    %v335 = vadd.f32 %v234, %v325
    %v336 = vadd.f32 %v235, %v332
    %v337 = vmul.f32 %v301, %v301
    %v338 = vmul.f32 %v302, %v302
    %v339 = vmul.f32 %v303, %v303
    %v340 = vmul.f32 %v304, %v304
    %v341 = vsel %vm203, %v337, 0.0
    %v342 = vrot.slane %v341, 4
    %v343 = vadd.f32 %v341, %v342
    %v344 = vrot.slane %v343, 2
    %v345 = vadd.f32 %v343, %v344
    %v346 = vrot.slane %v345, 1
    %v347 = vadd.f32 %v345, %v346
    %v348 = vsel %vm203, %v338, 0.0
    %v349 = vrot.slane %v348, 4
    %v350 = vadd.f32 %v348, %v349
    %v351 = vrot.slane %v350, 2
    %v352 = vadd.f32 %v350, %v351
    %v353 = vrot.slane %v352, 1
    %v354 = vadd.f32 %v352, %v353
    %v355 = vsel %vm203, %v339, 0.0
    %v356 = vrot.slane %v355, 4
    %v357 = vadd.f32 %v355, %v356
    %v358 = vrot.slane %v357, 2
    %v359 = vadd.f32 %v357, %v358
    %v360 = vrot.slane %v359, 1
    %v361 = vadd.f32 %v359, %v360
    %v362 = vsel %vm203, %v340, 0.0
    %v363 = vrot.slane %v362, 4
    %v364 = vadd.f32 %v362, %v363
    %v365 = vrot.slane %v364, 2
    %v366 = vadd.f32 %v364, %v365
    %v367 = vrot.slane %v366, 1
    %v368 = vadd.f32 %v366, %v367
    %v369 = vadd.f32 %v268, %v347
    %v370 = vadd.f32 %v269, %v354
    %v371 = vadd.f32 %v270, %v361
    %v372 = vadd.f32 %v271, %v368
    %v373 = vld [vmem:[#allocation7] sm:$0x1]
    %v374 = vld [vmem:[#allocation7 + $0x1] sm:$0x1]
    %v375 = vld [vmem:[#allocation7 + $0x2] sm:$0x1]
    %v376 = vld [vmem:[#allocation7 + $0x3] sm:$0x1]
    %v377 = vadd.f32 %v373, %v333
    %v378 = vadd.f32 %v374, %v334
    %v379 = vadd.f32 %v375, %v335
    %v380 = vadd.f32 %v376, %v336
    %381 = vst [vmem:[#allocation7] sm:$0x1] %v377
    %382 = vst [vmem:[#allocation7 + $0x1] sm:$0x1] %v378
    %383 = vst [vmem:[#allocation7 + $0x2] sm:$0x1] %v379
    %384 = vst [vmem:[#allocation7 + $0x3] sm:$0x1] %v380
    %v385 = vld [vmem:[#allocation8] sm:$0x1]
    %v386 = vld [vmem:[#allocation8 + $0x1] sm:$0x1]
    %v387 = vld [vmem:[#allocation8 + $0x2] sm:$0x1]
    %v388 = vld [vmem:[#allocation8 + $0x3] sm:$0x1]
    %v389 = vadd.f32 %v385, %v369
    %v390 = vadd.f32 %v386, %v370
    %v391 = vadd.f32 %v387, %v371
    %v392 = vadd.f32 %v388, %v372
    %393 = vst [vmem:[#allocation8] sm:$0x1] %v389
    %394 = vst [vmem:[#allocation8 + $0x1] sm:$0x1] %v390
    %395 = vst [vmem:[#allocation8 + $0x2] sm:$0x1] %v391
    %396 = vst [vmem:[#allocation8 + $0x3] sm:$0x1] %v392
    // Predicated region
    $region22: #{tpu_custom_call.1} parent=1 // pred_check
      _
    $region23: #{tpu_custom_call.1} parent=1 // pred_check_branch
      %398 = sbr.rel (0) target = $region25
    $region24: #{tpu_custom_call.1} parent=1 // pred_region
      %s400 = ssub.s32 64, 64
      %401 = vsyncadd [#allocation4], %s400
      %s402 = sshll.u32 [#allocation7], 4
      %s403 = int_to_ptr.vmem [resolvable:$true] %s402
      %408 = dma.vmem_to_hbm [thread:$0]  %s403, 64, %s2, [#allocation4], 16, 16, 1
    $region25: #{tpu_custom_call.1} parent=1 // pred_fallthru
      _
    // Predicated region
    $region26: #{tpu_custom_call.1} parent=1 // pred_check
      _
    $region27: #{tpu_custom_call.1} parent=1 // pred_check_branch
      %410 = sbr.rel (0) target = $region29
    $region28: #{tpu_custom_call.1} parent=1 // pred_region
      %s412 = ssub.s32 64, 64
      %413 = vsyncadd [#allocation9], %s412
      %s414 = sshll.u32 [#allocation8], 4
      %s415 = int_to_ptr.vmem [resolvable:$true] %s414
      %420 = dma.vmem_to_hbm [thread:$0]  %s415, 64, %s3, [#allocation9], 16, 16, 1
    $region29: #{tpu_custom_call.1} parent=1 // pred_fallthru
      _
    // Predicated region
    $region30: #{tpu_custom_call.1} parent=1 // pred_check
      _
    $region31: #{tpu_custom_call.1} parent=1 // pred_check_branch
      %422 = sbr.rel (0) target = $region33
    $region32: #{tpu_custom_call.1} parent=1 // pred_region
      %423 = dma.done [#allocation4], 64
    $region33: #{tpu_custom_call.1} parent=1 // pred_fallthru
      _
    // Predicated region
    $region34: #{tpu_custom_call.1} parent=1 // pred_check
      _
    $region35: #{tpu_custom_call.1} parent=1 // pred_check_branch
      %425 = sbr.rel (0) target = $region37
    $region36: #{tpu_custom_call.1} parent=1 // pred_region
      %426 = dma.done [#allocation9], 64
    $region37: #{tpu_custom_call.1} parent=1 // pred_fallthru
      _
    %427 = vsyncpa [#allocation3], 1
    %428 = vsyncpa [#allocation6], 1
    %429 = vsyncpa [#allocation4], 1
    %430 = vsyncpa [#allocation9], 1

</llo_original>
